<compile_context>
chip_gen: v7x
topology: tpu7x:2x2x1
jax: 0.10.0
libtpu: 0.0.40
codegen_flags: <defaults>
</compile_context>

<pallas_src>
import functools

import jax
import jax.numpy as jnp
from jax.experimental import pallas as pl
from jax.experimental.pallas import tpu as pltpu


def _kd_partial_kernel(n_rows, block_rows, logits_ref, labels_ref,
                       teacher_ref, student_ref, out_ref):
    i = pl.program_id(0)

    logits = logits_ref[...].astype(jnp.float32)              # (TN, C)
    tn, c = logits.shape

    # Valid-row mask for the (possibly partial) last block.
    row_in_block = jax.lax.broadcasted_iota(jnp.int32, (tn, 1), 0)
    valid = (i * block_rows + row_in_block) < n_rows          # (TN, 1) bool

    # --- CE partial: sum over valid rows of (logsumexp(shifted) - shifted[label])
    # row_max cancels, so it is never added back.
    row_max = jnp.max(logits, axis=-1, keepdims=True)         # (TN, 1)
    shifted = logits - row_max                                 # (TN, C)
    lse = jnp.log(jnp.sum(jnp.exp(shifted), axis=-1, keepdims=True))  # (TN, 1)
    # One-hot compare from a single (1,C) iota row, broadcast in the compare.
    class_ids = jax.lax.broadcasted_iota(jnp.int32, (1, c), 1)
    labels = labels_ref[...]                                   # (TN, 1) int32
    label_shifted = jnp.sum(
        jnp.where(class_ids == labels, shifted, 0.0), axis=-1, keepdims=True)
    ce_rows = lse - label_shifted                              # (TN, 1)
    # Mask AFTER the row reductions: garbage (Inf/NaN) in padded rows stays
    # confined to those rows and is dropped by the select.
    ce_sum = jnp.sum(jnp.where(valid, ce_rows, 0.0))

    # --- squared-difference partial sum -------------------------------------
    diff = (teacher_ref[...].astype(jnp.float32)
            - student_ref[...].astype(jnp.float32))            # (TN, D)
    sq_rows = jnp.sum(diff * diff, axis=-1, keepdims=True)     # (TN, 1)
    sq_sum = jnp.sum(jnp.where(valid, sq_rows, 0.0))

    # Lane-dense partial output: lane 0 = CE sum, lane 1 = squared-diff sum.
    lane = jax.lax.broadcasted_iota(jnp.int32, (1, 1, 128), 2)
    out_ref[...] = (jnp.where(lane == 0, ce_sum, 0.0)
                    + jnp.where(lane == 1, sq_sum, 0.0))


def _vmem_capacity_bytes():
    try:
        return int(pltpu.get_tpu_info().vmem_capacity_bytes)
    except Exception:
        return 64 * 1024 * 1024       # conservative (v7x per-TC) fallback


def _pick_row_tile(n, c, d, logits_bytes, feat_bytes, vmem_capacity):
    """Largest 16-aligned row tile whose double-buffered streams fit budget."""
    stream_budget = min(24 * 1024 * 1024, vmem_capacity // 3)
    # Double-buffered streams; the (TN,1) labels block lane-pads 1 -> 128.
    per_row = 2 * (c * logits_bytes + 2 * d * feat_bytes + 128 * 4)
    tn = (stream_budget // max(per_row, 1)) // 16 * 16
    tn = max(16, min(int(tn), 2048))
    padded_n = pl.cdiv(n, 16) * 16
    return int(min(tn, max(16, padded_n)))


def kd_loss(upred, utrue, lconf, lprior, lteach, lstud, *, block_rows=None):
    n, c = upred.shape
    d = lteach.shape[1]
    utrue = utrue.astype(jnp.int32)

    eb_l = jnp.dtype(upred.dtype).itemsize
    eb_f = jnp.dtype(lteach.dtype).itemsize
    cap = _vmem_capacity_bytes()

    if block_rows is None:
        block_rows = _pick_row_tile(n, c, d, eb_l, eb_f, cap)
    num_blocks = pl.cdiv(n, block_rows)

    # Per-buffer stream bytes (labels lane-padded 1->128 in VMEM), doubled for
    # the 2-deep pipeline, plus headroom for the f32 (TN,C) temporaries Mosaic
    # may materialize (shifted, exp(shifted), where results). Capped at 0.75x
    # physical VMEM (~48 MiB on v7x, 96 MiB on v5e/v6e).
    stream_bytes = block_rows * (c * eb_l + 2 * d * eb_f + 128 * 4)
    temp_bytes = 4 * block_rows * c * 4
    vmem_limit = int(min(cap * 3 // 4,
                         max(2 * stream_bytes + temp_bytes + 8 * 1024 * 1024,
                             16 * 1024 * 1024)))

    cost = pl.CostEstimate(
        flops=int(n * (4 * c + 3 * d)),
        transcendentals=int(n * (c + 1)),
        bytes_accessed=int(n * (c * eb_l + 2 * d * eb_f + 4)
                           + num_blocks * 128 * 4))

    kernel = functools.partial(_kd_partial_kernel, n, block_rows)
    partials = pl.pallas_call(
        kernel,
        out_shape=jax.ShapeDtypeStruct((num_blocks, 1, 128), jnp.float32),
        grid=(num_blocks,),
        in_specs=[
            pl.BlockSpec((block_rows, c), lambda i: (i, 0)),
            pl.BlockSpec((block_rows, 1), lambda i: (i, 0)),
            pl.BlockSpec((block_rows, d), lambda i: (i, 0)),
            pl.BlockSpec((block_rows, d), lambda i: (i, 0)),
        ],
        out_specs=pl.BlockSpec((1, 1, 128), lambda i: (i, 0, 0)),
        compiler_params=pltpu.CompilerParams(
            dimension_semantics=("parallel",),
            vmem_limit_bytes=vmem_limit),
        cost_estimate=cost,
    )(upred, utrue, lteach, lstud)

    partials = partials.reshape(num_blocks, 128)
    ce_sum = jnp.sum(partials[:, 0])
    sq_sum = jnp.sum(partials[:, 1])

    # Confidence stream never enters the kernel: mean(conf/prior) only needs a
    # global sum and a scalar divide.
    conf_sum = jnp.sum(lconf.astype(jnp.float32))

    ce = ce_sum / n                                  # CrossEntropyLoss (mean)
    mse = sq_sum / (n * d)                           # MSELoss (mean)
    prior = jnp.reshape(lprior, (-1,))[0].astype(jnp.float32)   # scalar prior
    obj2 = (conf_sum / n) / prior * mse              # mean(conf/prior) * mse
    return ce + obj2


def kd_loss_ref(upred, utrue, lconf, lprior, lteach, lstud):
    # Pure-JAX reference matching the PyTorch forward.
    labels = jnp.squeeze(utrue, axis=1)
    logp = jax.nn.log_softmax(upred.astype(jnp.float32), axis=-1)
    ce = -jnp.mean(jnp.take_along_axis(logp, labels[:, None], axis=-1))
    mse = jnp.mean((lteach.astype(jnp.float32) - lstud.astype(jnp.float32)) ** 2)
    obj2 = jnp.mean(lconf / lprior * mse)
    return ce + obj2


if __name__ == "__main__":
    key = jax.random.PRNGKey(0)
    k1, k2, k3, k4, k5 = jax.random.split(key, 5)

    # N deliberately NOT a multiple of the tile sizes used below, to exercise
    # the padded-row masking of the last block.
    N, C, D = 20, 16, 32
    upred = jax.random.normal(k1, (N, C), dtype=jnp.float32)
    utrue = jax.random.randint(k2, (N, 1), 0, C, dtype=jnp.int32)
    lconf = jax.nn.sigmoid(jax.random.normal(k3, (N, 1), dtype=jnp.float32))
    lprior = jnp.full((1, 1), 0.5, dtype=jnp.float32)
    lteach = jax.random.normal(k4, (N, D), dtype=jnp.float32)
    lstud = jax.random.normal(k5, (N, D), dtype=jnp.float32)

    ref = kd_loss_ref(upred, utrue, lconf, lprior, lteach, lstud)

    # Multi-block f32 path (grid=3, partial last block).
    out_tiled = kd_loss(upred, utrue, lconf, lprior, lteach, lstud, block_rows=8)
    out_tiled = jax.block_until_ready(out_tiled)
    assert jnp.allclose(out_tiled, ref, rtol=1e-5, atol=1e-5), (out_tiled, ref)

    # Auto-sized tile path (single block at these toy sizes).
    out_auto = kd_loss(upred, utrue, lconf, lprior, lteach, lstud)
    out_auto = jax.block_until_ready(out_auto)
    assert jnp.allclose(out_auto, ref, rtol=1e-5, atol=1e-5), (out_auto, ref)

    # bf16 streaming path (half the HBM bytes): grid=2, partial last block.
    upred_bf = upred.astype(jnp.bfloat16)
    lteach_bf = lteach.astype(jnp.bfloat16)
    lstud_bf = lstud.astype(jnp.bfloat16)
    ref_bf = kd_loss_ref(upred_bf, utrue, lconf, lprior, lteach_bf, lstud_bf)
    out_bf = kd_loss(upred_bf, utrue, lconf, lprior, lteach_bf, lstud_bf,
                     block_rows=16)
    out_bf = jax.block_until_ready(out_bf)
    assert jnp.allclose(out_bf, ref_bf, rtol=1e-4, atol=1e-4), (out_bf, ref_bf)

    print("KERNEL_OK")
</pallas_src>

<mosaic_0001>
module attributes {stable_mosaic.version = 11 : i64} {
  func.func @_kd_partial_kernel(%arg0: i32, %arg1: memref<8x16xf32, #tpu.memory_space<vmem>>, %arg2: memref<8x1xi32, #tpu.memory_space<vmem>>, %arg3: memref<8x32xf32, #tpu.memory_space<vmem>>, %arg4: memref<8x32xf32, #tpu.memory_space<vmem>>, %arg5: memref<1x1x128xf32, #tpu.memory_space<vmem>>) attributes {dimension_semantics = [#tpu.dimension_semantics<parallel>], iteration_bounds = array<i64: 3>, scalar_prefetch = 0 : i64, scratch_operands = 0 : i64, tpu.core_type = #tpu.core_type<tc>, window_params = [{transform_indices = @transform_0, window_bounds = array<i64: 8, 16>}, {transform_indices = @transform_1, window_bounds = array<i64: 8, 1>}, {transform_indices = @transform_2, window_bounds = array<i64: 8, 32>}, {transform_indices = @transform_3, window_bounds = array<i64: 8, 32>}, {transform_indices = @transform_4, window_bounds = array<i64: 1, 1, 128>}]} {
    %c0 = arith.constant 0 : index
    %c0_0 = arith.constant 0 : index
    %0 = vector.load %arg1[%c0, %c0_0] : memref<8x16xf32, #tpu.memory_space<vmem>>, vector<8x16xf32>
    %1 = tpu.iota {dimensions = array<i32: 0>} : vector<8x1xi32>
    %c8_i32 = arith.constant 8 : i32
    %2 = arith.muli %arg0, %c8_i32 : i32
    %3 = vector.broadcast %2 : i32 to vector<8x1xi32>
    %4 = arith.addi %3, %1 : vector<8x1xi32>
    %c20_i32 = arith.constant 20 : i32
    %5 = vector.broadcast %c20_i32 : i32 to vector<8x1xi32>
    %6 = arith.cmpi slt, %4, %5 : vector<8x1xi32>
    %cst = arith.constant dense<0xFF800000> : vector<8xf32>
    %7 = vector.multi_reduction <maximumf>, %0, %cst [1] : vector<8x16xf32> to vector<8xf32>
    %8 = vector.shape_cast %7 : vector<8xf32> to vector<8x1xf32>
    %9 = vector.broadcast %8 : vector<8x1xf32> to vector<8x16xf32>
    %10 = arith.subf %0, %9 : vector<8x16xf32>
    %11 = math.exp %10 : vector<8x16xf32>
    %cst_1 = arith.constant dense<0.000000e+00> : vector<8xf32>
    %12 = vector.multi_reduction <add>, %11, %cst_1 [1] : vector<8x16xf32> to vector<8xf32>
    %13 = vector.shape_cast %12 : vector<8xf32> to vector<8x1xf32>
    %14 = math.log %13 : vector<8x1xf32>
    %15 = tpu.iota {dimensions = array<i32: 1>} : vector<1x16xi32>
    %c0_2 = arith.constant 0 : index
    %c0_3 = arith.constant 0 : index
    %16 = vector.load %arg2[%c0_2, %c0_3] : memref<8x1xi32, #tpu.memory_space<vmem>>, vector<8x1xi32>
    %17 = vector.broadcast %15 : vector<1x16xi32> to vector<8x16xi32>
    %18 = vector.broadcast %16 : vector<8x1xi32> to vector<8x16xi32>
    %19 = arith.cmpi eq, %17, %18 : vector<8x16xi32>
    %cst_4 = arith.constant 0.000000e+00 : f32
    %20 = vector.broadcast %cst_4 : f32 to vector<8x16xf32>
    %21 = arith.select %19, %10, %20 : vector<8x16xi1>, vector<8x16xf32>
    %cst_5 = arith.constant dense<0.000000e+00> : vector<8xf32>
    %22 = vector.multi_reduction <add>, %21, %cst_5 [1] : vector<8x16xf32> to vector<8xf32>
    %23 = vector.shape_cast %22 : vector<8xf32> to vector<8x1xf32>
    %24 = arith.subf %14, %23 : vector<8x1xf32>
    %cst_6 = arith.constant 0.000000e+00 : f32
    %25 = vector.broadcast %cst_6 : f32 to vector<8x1xf32>
    %26 = arith.select %6, %24, %25 : vector<8x1xi1>, vector<8x1xf32>
    %27 = vector.shape_cast %26 : vector<8x1xf32> to vector<1x8x1xf32>
    %cst_7 = arith.constant dense<0.000000e+00> : vector<1xf32>
    %28 = vector.multi_reduction <add>, %27, %cst_7 [1, 2] : vector<1x8x1xf32> to vector<1xf32>
    %29 = vector.shape_cast %28 : vector<1xf32> to vector<1x1x1xf32>
    %30 = vector.extract %29[0, 0, 0] : f32 from vector<1x1x1xf32>
    %c0_8 = arith.constant 0 : index
    %c0_9 = arith.constant 0 : index
    %31 = vector.load %arg3[%c0_8, %c0_9] : memref<8x32xf32, #tpu.memory_space<vmem>>, vector<8x32xf32>
    %c0_10 = arith.constant 0 : index
    %c0_11 = arith.constant 0 : index
    %32 = vector.load %arg4[%c0_10, %c0_11] : memref<8x32xf32, #tpu.memory_space<vmem>>, vector<8x32xf32>
    %33 = arith.subf %31, %32 : vector<8x32xf32>
    %34 = arith.mulf %33, %33 : vector<8x32xf32>
    %cst_12 = arith.constant dense<0.000000e+00> : vector<8xf32>
    %35 = vector.multi_reduction <add>, %34, %cst_12 [1] : vector<8x32xf32> to vector<8xf32>
    %36 = vector.shape_cast %35 : vector<8xf32> to vector<8x1xf32>
    %cst_13 = arith.constant 0.000000e+00 : f32
    %37 = vector.broadcast %cst_13 : f32 to vector<8x1xf32>
    %38 = arith.select %6, %36, %37 : vector<8x1xi1>, vector<8x1xf32>
    %39 = vector.shape_cast %38 : vector<8x1xf32> to vector<1x8x1xf32>
    %cst_14 = arith.constant dense<0.000000e+00> : vector<1xf32>
    %40 = vector.multi_reduction <add>, %39, %cst_14 [1, 2] : vector<1x8x1xf32> to vector<1xf32>
    %41 = vector.shape_cast %40 : vector<1xf32> to vector<1x1x1xf32>
    %42 = vector.extract %41[0, 0, 0] : f32 from vector<1x1x1xf32>
    %43 = tpu.iota {dimensions = array<i32: 2>} : vector<1x1x128xi32>
    %c0_i32 = arith.constant 0 : i32
    %44 = vector.broadcast %c0_i32 : i32 to vector<1x1x128xi32>
    %45 = arith.cmpi eq, %43, %44 : vector<1x1x128xi32>
    %cst_15 = arith.constant 0.000000e+00 : f32
    %46 = vector.broadcast %30 : f32 to vector<1x1x128xf32>
    %47 = vector.broadcast %cst_15 : f32 to vector<1x1x128xf32>
    %48 = arith.select %45, %46, %47 : vector<1x1x128xi1>, vector<1x1x128xf32>
    %c1_i32 = arith.constant 1 : i32
    %49 = vector.broadcast %c1_i32 : i32 to vector<1x1x128xi32>
    %50 = arith.cmpi eq, %43, %49 : vector<1x1x128xi32>
    %cst_16 = arith.constant 0.000000e+00 : f32
    %51 = vector.broadcast %42 : f32 to vector<1x1x128xf32>
    %52 = vector.broadcast %cst_16 : f32 to vector<1x1x128xf32>
    %53 = arith.select %50, %51, %52 : vector<1x1x128xi1>, vector<1x1x128xf32>
    %54 = arith.addf %48, %53 : vector<1x1x128xf32>
    %c0_17 = arith.constant 0 : index
    %c0_18 = arith.constant 0 : index
    %c0_19 = arith.constant 0 : index
    %55 = vector.load %arg5[%c0_17, %c0_18, %c0_19] : memref<1x1x128xf32, #tpu.memory_space<vmem>>, vector<1x1x128xf32>
    tpu.vector_store %arg5[%c0_17, %c0_18, %c0_19], %54 {strides = array<i32>} : memref<1x1x128xf32, #tpu.memory_space<vmem>>, vector<1x1x128xf32>,
    return
  }
  func.func @transform_0(%arg0: i32) -> (i32, i32) {
    %c0_i32 = arith.constant 0 : i32
    %c0_i32_0 = arith.constant 0 : i32
    return %arg0, %c0_i32 : i32, i32
  }
  func.func @transform_1(%arg0: i32) -> (i32, i32) {
    %c0_i32 = arith.constant 0 : i32
    %c0_i32_0 = arith.constant 0 : i32
    return %arg0, %c0_i32 : i32, i32
  }
  func.func @transform_2(%arg0: i32) -> (i32, i32) {
    %c0_i32 = arith.constant 0 : i32
    %c0_i32_0 = arith.constant 0 : i32
    return %arg0, %c0_i32 : i32, i32
  }
  func.func @transform_3(%arg0: i32) -> (i32, i32) {
    %c0_i32 = arith.constant 0 : i32
    %c0_i32_0 = arith.constant 0 : i32
    return %arg0, %c0_i32 : i32, i32
  }
  func.func @transform_4(%arg0: i32) -> (i32, i32, i32) {
    %c0_i32 = arith.constant 0 : i32
    %c0_i32_0 = arith.constant 0 : i32
    %c0_i32_1 = arith.constant 0 : i32
    return %arg0, %c0_i32, %c0_i32_0 : i32, i32, i32
  }
}

</mosaic_0001>

<llo_original>
// kernel: tpu_custom_call.1
$region0: #{tpu_custom_call.1}
  #allocation0 [shape = 'u32[]', space=smem, size = 0x4, offset = 0x4, fixed_abs, tag = 'smem constant byte address 0x4 - core index']
  #allocation1 [shape = 'u32[144,128]{1,0:T(1,128)}', space=vmem, size = 0x12000, scoped, tag = 'internal scratch']
  %s0 = inlined_call_operand.vmem [shape: f32[20,16], index: 0, kind: input, shape index: {}]
  %s1 = inlined_call_operand.vmem [shape: s32[20,1], index: 1, kind: input, shape index: {}]
  %s2 = inlined_call_operand.vmem [shape: f32[20,32], index: 2, kind: input, shape index: {}]
  %s3 = inlined_call_operand.vmem [shape: f32[20,32], index: 3, kind: input, shape index: {}]
  %s4 = inlined_call_operand.hbm [shape: f32[3,1,128], index: 4, kind: output, shape index: {}]
  %s5 = sld [smem:[#allocation0]]
  $region49: #{tpu_custom_call.1} parent=0
    _
  %s7 = ssub.s32 1, %s5
  %s8 = scalar_select 0, %s7, %s5
  $region1: #{tpu_custom_call.1} parent=0
    #allocation2 [shape = 'u8[1024]{0}', space=vmem, size = 0x400, scoped, tag = 'output window, operand 0']
    #allocation3 [shape = 's32[2]{0}', space=sflag, size = 0x8, scoped, tag = 'scoped memory for tpu_custom_call.1']
    %9 = vsyncpa [#allocation3], 0
    %s10 = scalar_lea.sflag [#allocation3], 1
    %11 = vsyncpa %s10, 0
    loop: start=0, step=1, limit=5
    $region2: #{tpu_custom_call.1} parent=1 // loop_pre_header
      _
    $region3: #{tpu_custom_call.1} parent=1 // loop_header
      %s13 = sphi 0, %s17
      %p14 = scmp.ge.s32.totalorder %s13, 5
      %s23 = sphi 0, %s25
      %s26 = sphi 0, %s23
      %s27 = sphi 0, %s26
      %s43 = sphi 0, %s27
      %s49 = sphi 0, %s51
      %s52 = sphi 0, %s49
      %s53 = sphi 0, %s52
      %s69 = sphi 0, %s53
      %s75 = sphi 0, %s77
      %s78 = sphi 0, %s75
      %s79 = sphi 0, %s78
      %s95 = sphi 0, %s79
      %s101 = sphi 0, %s103
      %s104 = sphi 0, %s101
      %s105 = sphi 0, %s104
      %s121 = sphi 0, %s105
      %s127 = sphi 0, %s129
      %s130 = sphi 0, %s127
      %s131 = sphi 0, %s130
      %s147 = sphi 0, %s131
    $region4: #{tpu_custom_call.1} parent=1 // loop_header_branch
      %16 = sbr.rel (%p14) target = $region8
    $region5: #{tpu_custom_call.1} parent=1 // loop_body
      %s18 = ssub.s32 %s13, 1
      %s19 = ssub.s32 %s13, 2
      %s20 = sadd.s32 %s13, 1
      %s21 = ssub.s32 %s13, %s20
      %p22 = scmp.eq.s32.totalorder %s21, 0
      %s24 = sadd.s32 %s23, 1
      %s25 = scalar_select %p22, %s23, %s24
      %p28 = pneg %p22
      %p29 = scmp.eq.s32.totalorder %s13, 2
      %p30 = por %p28, %p29
      %p31 = scmp.ne.s32.totalorder %s23, %s26
      %p32 = scmp.eq.s32.totalorder %s13, 0
      %p33 = por %p31, %p32
      %p34 = scmp.ne.s32.totalorder %s23, %s26
      %p35 = scmp.eq.s32.totalorder %s18, 2
      %p36 = por %p34, %p35
      %p37 = scmp.ne.s32.totalorder %s26, %s27
      %p38 = scmp.eq.s32.totalorder %s18, 0
      %p39 = por %p37, %p38
      %p40 = scmp.ne.s32.totalorder %s26, %s27
      %p41 = scmp.eq.s32.totalorder %s19, 2
      %p42 = por %p40, %p41
      %p44 = scmp.ne.s32.totalorder %s27, %s43
      %p45 = scmp.eq.s32.totalorder %s19, 0
      %p46 = por %p44, %p45
      %s47 = ssub.s32 %s13, %s20
      %p48 = scmp.eq.s32.totalorder %s47, 0
      %s50 = sadd.s32 %s49, 1
      %s51 = scalar_select %p48, %s49, %s50
      %p54 = pneg %p48
      %p55 = scmp.eq.s32.totalorder %s13, 2
      %p56 = por %p54, %p55
      %p57 = scmp.ne.s32.totalorder %s49, %s52
      %p58 = scmp.eq.s32.totalorder %s13, 0
      %p59 = por %p57, %p58
      %p60 = scmp.ne.s32.totalorder %s49, %s52
      %p61 = scmp.eq.s32.totalorder %s18, 2
      %p62 = por %p60, %p61
      %p63 = scmp.ne.s32.totalorder %s52, %s53
      %p64 = scmp.eq.s32.totalorder %s18, 0
      %p65 = por %p63, %p64
      %p66 = scmp.ne.s32.totalorder %s52, %s53
      %p67 = scmp.eq.s32.totalorder %s19, 2
      %p68 = por %p66, %p67
      %p70 = scmp.ne.s32.totalorder %s53, %s69
      %p71 = scmp.eq.s32.totalorder %s19, 0
      %p72 = por %p70, %p71
      %s73 = ssub.s32 %s13, %s20
      %p74 = scmp.eq.s32.totalorder %s73, 0
      %s76 = sadd.s32 %s75, 1
      %s77 = scalar_select %p74, %s75, %s76
      %p80 = pneg %p74
      %p81 = scmp.eq.s32.totalorder %s13, 2
      %p82 = por %p80, %p81
      %p83 = scmp.ne.s32.totalorder %s75, %s78
      %p84 = scmp.eq.s32.totalorder %s13, 0
      %p85 = por %p83, %p84
      %p86 = scmp.ne.s32.totalorder %s75, %s78
      %p87 = scmp.eq.s32.totalorder %s18, 2
      %p88 = por %p86, %p87
      %p89 = scmp.ne.s32.totalorder %s78, %s79
      %p90 = scmp.eq.s32.totalorder %s18, 0
      %p91 = por %p89, %p90
      %p92 = scmp.ne.s32.totalorder %s78, %s79
      %p93 = scmp.eq.s32.totalorder %s19, 2
      %p94 = por %p92, %p93
      %p96 = scmp.ne.s32.totalorder %s79, %s95
      %p97 = scmp.eq.s32.totalorder %s19, 0
      %p98 = por %p96, %p97
      %s99 = ssub.s32 %s13, %s20
      %p100 = scmp.eq.s32.totalorder %s99, 0
      %s102 = sadd.s32 %s101, 1
      %s103 = scalar_select %p100, %s101, %s102
      %p106 = pneg %p100
      %p107 = scmp.eq.s32.totalorder %s13, 2
      %p108 = por %p106, %p107
      %p109 = scmp.ne.s32.totalorder %s101, %s104
      %p110 = scmp.eq.s32.totalorder %s13, 0
      %p111 = por %p109, %p110
      %p112 = scmp.ne.s32.totalorder %s101, %s104
      %p113 = scmp.eq.s32.totalorder %s18, 2
      %p114 = por %p112, %p113
      %p115 = scmp.ne.s32.totalorder %s104, %s105
      %p116 = scmp.eq.s32.totalorder %s18, 0
      %p117 = por %p115, %p116
      %p118 = scmp.ne.s32.totalorder %s104, %s105
      %p119 = scmp.eq.s32.totalorder %s19, 2
      %p120 = por %p118, %p119
      %p122 = scmp.ne.s32.totalorder %s105, %s121
      %p123 = scmp.eq.s32.totalorder %s19, 0
      %p124 = por %p122, %p123
      %s125 = ssub.s32 %s13, %s20
      %p126 = scmp.eq.s32.totalorder %s125, 0
      %s128 = sadd.s32 %s127, 1
      %s129 = scalar_select %p126, %s127, %s128
      %p132 = pneg %p126
      %p133 = scmp.eq.s32.totalorder %s13, 2
      %p134 = por %p132, %p133
      %p135 = scmp.ne.s32.totalorder %s127, %s130
      %p136 = scmp.eq.s32.totalorder %s13, 0
      %p137 = por %p135, %p136
      %p138 = scmp.ne.s32.totalorder %s127, %s130
      %p139 = scmp.eq.s32.totalorder %s18, 2
      %p140 = por %p138, %p139
      %p141 = scmp.ne.s32.totalorder %s130, %s131
      %p142 = scmp.eq.s32.totalorder %s18, 0
      %p143 = por %p141, %p142
      %p144 = scmp.ne.s32.totalorder %s130, %s131
      %p145 = scmp.eq.s32.totalorder %s19, 2
      %p146 = por %p144, %p145
      %p148 = scmp.ne.s32.totalorder %s131, %s147
      %p149 = scmp.eq.s32.totalorder %s19, 0
      %p150 = por %p148, %p149
      %p151 = scmp.le.s32.totalorder 1, %s13
      %p152 = scmp.lt.s32.totalorder %s13, 4
      %p153 = pnand %p151, %p152
      %p154 = pneg %p153
      // Predicated region
      $region9: #{tpu_custom_call.1} parent=5 // pred_check
        _
      $region10: #{tpu_custom_call.1} parent=5 // pred_check_branch
        %156 = sbr.rel (%p153) target = $region12
      $region11: #{tpu_custom_call.1} parent=5 // pred_region
        %s157 = ssub.s32 %s13, 1
      $region12: #{tpu_custom_call.1} parent=5 // pred_fallthru
        _
      %p158 = scmp.lt.s32.totalorder %s13, 3
      // Predicated region
      $region13: #{tpu_custom_call.1} parent=5 // pred_check
        %p159 = pneg %p158
      $region14: #{tpu_custom_call.1} parent=5 // pred_check_branch
        %161 = sbr.rel (%p159) target = $region16
      $region15: #{tpu_custom_call.1} parent=5 // pred_region
        // Predicated region
        $region17: #{tpu_custom_call.1} parent=15 // pred_check
          %p162 = pneg %p33
        $region18: #{tpu_custom_call.1} parent=15 // pred_check_branch
          %164 = sbr.rel (%p162) target = $region20
        $region19: #{tpu_custom_call.1} parent=15 // pred_region
          %p165 = scmp.lt.s32.totalorder %s13, 2
          %s166 = scalar_select %p165, %s13, 2
          %s167 = smul.addr %s166, 8
          %s168 = scalar_lea.vmem %s0, %s167
        $region20: #{tpu_custom_call.1} parent=15 // pred_fallthru
          _
        // Predicated region
        $region21: #{tpu_custom_call.1} parent=15 // pred_check
          %p169 = pneg %p59
        $region22: #{tpu_custom_call.1} parent=15 // pred_check_branch
          %171 = sbr.rel (%p169) target = $region24
        $region23: #{tpu_custom_call.1} parent=15 // pred_region
          %p172 = scmp.lt.s32.totalorder %s13, 2
          %s173 = scalar_select %p172, %s13, 2
          %s174 = smul.addr %s173, 8
          %s175 = scalar_lea.vmem %s1, %s174
        $region24: #{tpu_custom_call.1} parent=15 // pred_fallthru
          _
        // Predicated region
        $region25: #{tpu_custom_call.1} parent=15 // pred_check
          %p176 = pneg %p85
        $region26: #{tpu_custom_call.1} parent=15 // pred_check_branch
          %178 = sbr.rel (%p176) target = $region28
        $region27: #{tpu_custom_call.1} parent=15 // pred_region
          %p179 = scmp.lt.s32.totalorder %s13, 2
          %s180 = scalar_select %p179, %s13, 2
          %s181 = smul.addr %s180, 8
          %s182 = scalar_lea.vmem %s2, %s181
        $region28: #{tpu_custom_call.1} parent=15 // pred_fallthru
          _
        // Predicated region
        $region29: #{tpu_custom_call.1} parent=15 // pred_check
          %p183 = pneg %p111
        $region30: #{tpu_custom_call.1} parent=15 // pred_check_branch
          %185 = sbr.rel (%p183) target = $region32
        $region31: #{tpu_custom_call.1} parent=15 // pred_region
          %p186 = scmp.lt.s32.totalorder %s13, 2
          %s187 = scalar_select %p186, %s13, 2
          %s188 = smul.addr %s187, 8
          %s189 = scalar_lea.vmem %s3, %s188
        $region32: #{tpu_custom_call.1} parent=15 // pred_fallthru
          _
      $region16: #{tpu_custom_call.1} parent=5 // pred_fallthru
        _
      %p190 = scmp.le.s32.totalorder 1, %s13
      %p191 = scmp.lt.s32.totalorder %s13, 4
      %p192 = pnand %p190, %p191
      %p193 = pneg %p192
      // Predicated region
      $region33: #{tpu_custom_call.1} parent=5 // pred_check
        _
      $region34: #{tpu_custom_call.1} parent=5 // pred_check_branch
        %195 = sbr.rel (%p192) target = $region36
      $region35: #{tpu_custom_call.1} parent=5 // pred_region
        %s196 = ssub.s32 %s13, 1
        %p197 = scmp.lt.s32.totalorder %s18, 2
        %s198 = scalar_select %p197, %s18, 2
        %s199 = smul.addr %s198, 8
        %s200 = scalar_lea.vmem %s0, %s199
        %p201 = pneg %p39
        %p202 = pneg %p36
        %p203 = scmp.lt.s32.totalorder %s18, 2
        %s204 = scalar_select %p203, %s18, 2
        %s205 = smul.addr %s204, 8
        %s206 = scalar_lea.vmem %s1, %s205
        %p207 = pneg %p65
        %p208 = pneg %p62
        %p209 = scmp.lt.s32.totalorder %s18, 2
        %s210 = scalar_select %p209, %s18, 2
        %s211 = smul.addr %s210, 8
        %s212 = scalar_lea.vmem %s2, %s211
        %p213 = pneg %p91
        %p214 = pneg %p88
        %p215 = scmp.lt.s32.totalorder %s18, 2
        %s216 = scalar_select %p215, %s18, 2
        %s217 = smul.addr %s216, 8
        %s218 = scalar_lea.vmem %s3, %s217
        %p219 = pneg %p117
        %p220 = pneg %p114
        %p221 = pneg %p143
        %p222 = pneg %p140
        %s223 = sand.u32 %s130, 1
        %s224 = scalar_lea.sflag [#allocation3], %s223
        %s225 = sand.u32 %s130, 1
        %s226 = scalar_lea.vmem [#allocation2], %s225
        %p227 = scmp.lt.s32.totalorder %s18, 2
        %s228 = scalar_select %p227, %s18, 2
        %s229 = smul.addr %s228, 8
        %s230 = scalar_lea.vmem %s0, %s229
        %p231 = scmp.lt.s32.totalorder %s18, 2
        %s232 = scalar_select %p231, %s18, 2
        %s233 = smul.addr %s232, 8
        %s234 = scalar_lea.vmem %s1, %s233
        %p235 = scmp.lt.s32.totalorder %s18, 2
        %s236 = scalar_select %p235, %s18, 2
        %s237 = smul.addr %s236, 8
        %s238 = scalar_lea.vmem %s2, %s237
        %p239 = scmp.lt.s32.totalorder %s18, 2
        %s240 = scalar_select %p239, %s18, 2
        %s241 = smul.addr %s240, 8
        %s242 = scalar_lea.vmem %s3, %s241
        %v243 = vld [vmem:[%s230] sm:$0xff]
        %v244 = vlaneseq
        %v245 = vshrl.u32 %v244, 7
        %s246 = smul.u32 %s18, 8
        %v247 = vstv %s246
        %v248 = vadd.s32 %v247, %v245
        %vm249 = vcmp.lt.s32.totalorder %v248, 20
        %vm250 = vcmask 130048
        %v251 = vsel %vm250, %v243, -inf
        %252 = vmax.xlane.f32.xlu0 %v251
        %v253 = vpop.xlane.xlu0 %252
        %v254 = vsub.f32 %v243, %v253
        %v255 = vmul.f32 %v254, 1.442695
        %v256 = vpow.pop %v255
        %v257 = vsel %vm250, %v256, 0.0
        %258 = vadd.xlane.f32.xlu0 %v257
        %v259 = vpop.xlane.xlu0 %258
        %v260 = vlog2.pop %v259
        %v261 = vmul.f32 %v260, 0.6931472
        %v262 = vlaneseq
        %v263 = vand.u32 %v262, 127
        %v264 = vld [vmem:[%s234] sm:$0xff]
        %265 = vset.pattern.permute.xlu0 0
        %266 = vperm.xlu0 %265, %v264
        %v267 = vpop.permute.xlu0 %266
        %vm268 = vcmp.eq.s32.totalorder %v263, %v267
        %v269 = vsel %vm268, %v254, 0.0
        %v270 = vsel %vm250, %v269, 0.0
        %271 = vadd.xlane.f32.xlu0 %v270
        %v272 = vpop.xlane.xlu0 %271
        %v273 = vsub.f32 %v261, %v272
        %v274 = vsel %vm249, %v273, 0.0
        %vm275 = vcmask 7168
        %v276 = vsel %vm275, %v274, 0.0
        %277 = vadd.xlane.f32.xlu0 %v276
        %v278 = vpop.xlane.xlu0 %277
        %v279 = vrot.slane %v278, 4
        %v280 = vadd.f32 %v278, %v279
        %v281 = vrot.slane %v280, 2
        %v282 = vadd.f32 %v280, %v281
        %v283 = vrot.slane %v282, 1
        %v284 = vadd.f32 %v282, %v283
        %s285 = vtos %v284
        %v286 = vld [vmem:[%s238] sm:$0xff]
        %v287 = vld [vmem:[%s242] sm:$0xff]
        %v288 = vsub.f32 %v286, %v287
        %v289 = vmul.f32 %v288, %v288
        %vm290 = vcmask 261120
        %v291 = vsel %vm290, %v289, 0.0
        %292 = vadd.xlane.f32.xlu0 %v291
        %v293 = vpop.xlane.xlu0 %292
        %v294 = vsel %vm249, %v293, 0.0
        %v295 = vsel %vm275, %v294, 0.0
        %296 = vadd.xlane.f32.xlu0 %v295
        %v297 = vpop.xlane.xlu0 %296
        %v298 = vrot.slane %v297, 4
        %v299 = vadd.f32 %v297, %v298
        %v300 = vrot.slane %v299, 2
        %v301 = vadd.f32 %v299, %v300
        %v302 = vrot.slane %v301, 1
        %v303 = vadd.f32 %v301, %v302
        %s304 = vtos %v303
        %vm305 = vcmp.eq.s32.totalorder %v263, 0
        %v306 = vstv %s285
        %v307 = vsel %vm305, %v306, 0.0
        %vm308 = vcmp.eq.s32.totalorder %v263, 1
        %v309 = vstv %s304
        %v310 = vsel %vm308, %v309, 0.0
        %v311 = vadd.f32 %v307, %v310
        %312 = vst [vmem:[%s226] sm:$0x1] %v311
        %s313 = sand.u32 %s130, 1
        %s314 = scalar_lea.sflag [#allocation3], %s313
        %s315 = sand.u32 %s130, 1
        %s316 = scalar_lea.vmem [#allocation2], %s315
        // Predicated region
        $region37: #{tpu_custom_call.1} parent=35 // pred_check
          %p317 = pneg %p140
        $region38: #{tpu_custom_call.1} parent=35 // pred_check_branch
          %319 = sbr.rel (%p317) target = $region40
        $region39: #{tpu_custom_call.1} parent=35 // pred_region
          %s321 = ssub.s32 16, 16
          %322 = vsyncadd %s314, %s321
          %s323 = smul.addr %s18, 16
          %s324 = scalar_lea.hbm %s4, %s323
          %s326 = sshll.u32 %s316, 4
          %s327 = int_to_ptr.vmem [resolvable:$true] %s326
          %329 = dma.vmem_to_hbm [thread:$0]  %s327, 16, %s324, %s314
        $region40: #{tpu_custom_call.1} parent=35 // pred_fallthru
          _
      $region36: #{tpu_custom_call.1} parent=5 // pred_fallthru
        _
      %p330 = scmp.le.s32.totalorder 2, %s13
      // Predicated region
      $region41: #{tpu_custom_call.1} parent=5 // pred_check
        %p331 = pneg %p330
      $region42: #{tpu_custom_call.1} parent=5 // pred_check_branch
        %333 = sbr.rel (%p331) target = $region44
      $region43: #{tpu_custom_call.1} parent=5 // pred_region
        %s334 = ssub.s32 %s13, 2
        // Predicated region
        $region45: #{tpu_custom_call.1} parent=43 // pred_check
          %p335 = pneg %p146
        $region46: #{tpu_custom_call.1} parent=43 // pred_check_branch
          %337 = sbr.rel (%p335) target = $region48
        $region47: #{tpu_custom_call.1} parent=43 // pred_region
          %s338 = sand.u32 %s131, 1
          %s339 = scalar_lea.sflag [#allocation3], %s338
          %s340 = sand.u32 %s131, 1
          %s341 = scalar_lea.vmem [#allocation2], %s340
          %342 = dma.done %s339, 16
        $region48: #{tpu_custom_call.1} parent=43 // pred_fallthru
          _
      $region44: #{tpu_custom_call.1} parent=5 // pred_fallthru
        _
    $region6: #{tpu_custom_call.1} parent=1 // loop_footer
      %s17 = sadd.s32 1, %s13
    $region7: #{tpu_custom_call.1} parent=1 // loop_footer_branch
      %12 = sbr.rel target = $region3
    $region8: #{tpu_custom_call.1} parent=1 // loop_exit
      _
    %343 = vsyncpa [#allocation3], 1
    %s344 = scalar_lea.sflag [#allocation3], 1
    %345 = vsyncpa %s344, 1

</llo_original>
